<compile_context>
chip_gen: v7x
topology: tpu7x:2x2x1
jax: 0.10.0
libtpu: 0.0.40
codegen_flags: <defaults>
</compile_context>

<pallas_src>
import functools

import jax
import jax.numpy as jnp
from jax.experimental import pallas as pl
from jax.experimental.pallas import tpu as pltpu


def _round_up(a, b):
    return (a + b - 1) // b * b


def _tensorcores_per_chip():
    """2 on dual-TensorCore (megacore-style) chips, 1 on v5e/v6e, 1 on error."""
    try:
        kind = jax.devices()[0].device_kind.lower()
    except Exception:  # pragma: no cover - defensive
        return 1
    if any(tag in kind for tag in ("v4", "v5p", "7")):
        return 2
    return 1


def _time_laplace_kernel(x_ref, num_ref, den_ref, nacc_ref, dacc_ref, *,
                         n, tile_n, nblocks, blocks_per_par, needs_mask):
    # x_ref: (t, tile_n) tile of the (t, n) array; columns beyond n (if any)
    # contain unspecified data and are masked to zero below.
    b = pl.program_id(1)

    @pl.when(b == 0)
    def _init():
        nacc_ref[...] = jnp.zeros_like(nacc_ref)
        dacc_ref[...] = jnp.zeros_like(dacc_ref)

    xp = x_ref[...].astype(jnp.float32)          # per-tile cast (bf16/fp16 ok)
    t = xp.shape[0]

    if needs_mask:
        # Global (unclamped) block index; the index_map clamps the DMA so a
        # duplicate block re-reads valid data, and this mask zeros it out.
        j = pl.program_id(0) * blocks_per_par + pl.program_id(1)
        col = j * tile_n + jax.lax.broadcasted_iota(jnp.int32, xp.shape, 1)
        xp = jnp.where(col < n, xp, 0.0)

    # conv1d([-1, 4, -1], zero padding=1) along time; boundaries handled
    # explicitly instead of padding the DMA'd tile.
    if t >= 3:
        y_mid = 4.0 * xp[1:t - 1, :] - xp[0:t - 2, :] - xp[2:t, :]
        mid_sq = jnp.sum(y_mid * y_mid, axis=0, keepdims=True)   # (1, tile_n)
    else:
        mid_sq = 0.0
    if t >= 2:
        y_first = 4.0 * xp[0:1, :] - xp[1:2, :]
        y_last = 4.0 * xp[t - 1:t, :] - xp[t - 2:t - 1, :]
        edge_sq = y_first * y_first + y_last * y_last             # (1, tile_n)
    else:
        edge_sq = 16.0 * xp[0:1, :] * xp[0:1, :]

    # Vreg-wide accumulation: only a sublane reduce per block, full cross-lane
    # reduce deferred to the finalize branch.
    nacc_ref[...] += mid_sq + edge_sq
    dacc_ref[...] += jnp.sum(xp * xp, axis=0, keepdims=True)

    @pl.when(b == pl.num_programs(1) - 1)
    def _finalize():
        num_ref[...] = jnp.sum(nacc_ref[...]).reshape(1, 1, 1)
        den_ref[...] = jnp.sum(dacc_ref[...]).reshape(1, 1, 1)


def time_laplace_l2_3d(x, avg=False):
    """JAX/Pallas equivalent of TimeLaplaceL23d(padding=None).forward(x, avg).

    With the default padding the Laplace output has the same element count as
    x, so mean/mean == sum/sum and `avg` needs no special handling.
    """
    oc, ic, t = x.shape
    n = oc * ic
    itemsize = jnp.dtype(x.dtype).itemsize

    # Lane-dense layout: time on the sublane axis, oc*ic on the lane axis.
    # NOTE: this transpose is one extra HBM pass; for the small conv-weight
    # tensors this regularizer sees it is negligible.
    # TODO(synk): for very large N, DMA (tile_n, t) blocks from the native
    # layout and transpose per-tile in-kernel to avoid this pass.
    xt = jnp.transpose(x.reshape(n, t))                     # (t, n), native dtype

    # Tile over N. Budget: one input block <= ~2 MiB native dtype (double
    # buffered = 4 MiB) + f32 temporaries -> comfortably inside v5e/v6e/v7x
    # scoped VMEM with the 32 MiB limit below. Cap lanes at 32768.
    n128 = _round_up(n, 128)
    budget_bytes = 2 * 1024 * 1024
    max_lanes = max(128, (budget_bytes // max(1, t * itemsize)) // 128 * 128)
    tile_n = int(min(n128, max_lanes, 32768))

    nblocks = pl.cdiv(n, tile_n)
    num_tc = _tensorcores_per_chip()
    num_par = num_tc if nblocks >= num_tc else 1            # 1 on v5e/v6e
    blocks_per_par = pl.cdiv(nblocks, num_par)
    needs_mask = (n % tile_n != 0) or (num_par * blocks_per_par != nblocks)

    def x_index_map(p, b):
        j = p * blocks_per_par + b
        # Clamp so the DMA never targets a fully out-of-bounds block when the
        # parallel split doesn't divide nblocks; the kernel masks duplicates.
        return (0, jnp.minimum(j, nblocks - 1))

    kernel = functools.partial(
        _time_laplace_kernel, n=n, tile_n=tile_n, nblocks=nblocks,
        blocks_per_par=blocks_per_par, needs_mask=needs_mask)

    num_parts, den_parts = pl.pallas_call(
        kernel,
        out_shape=(
            jax.ShapeDtypeStruct((num_par, 1, 1), jnp.float32),
            jax.ShapeDtypeStruct((num_par, 1, 1), jnp.float32),
        ),
        grid_spec=pltpu.PrefetchScalarGridSpec(
            num_scalar_prefetch=0,
            grid=(num_par, blocks_per_par),
            in_specs=[pl.BlockSpec((t, tile_n), x_index_map)],
            out_specs=(
                pl.BlockSpec((1, 1, 1), lambda p, b: (p, 0, 0)),
                pl.BlockSpec((1, 1, 1), lambda p, b: (p, 0, 0)),
            ),
            scratch_shapes=[
                pltpu.VMEM((1, tile_n), jnp.float32),   # numerator partials
                pltpu.VMEM((1, tile_n), jnp.float32),   # denominator partials
            ],
        ),
        compiler_params=pltpu.CompilerParams(
            dimension_semantics=("parallel", "arbitrary"),
            vmem_limit_bytes=32 * 1024 * 1024),
        cost_estimate=pl.CostEstimate(
            flops=7 * n * t,
            transcendentals=0,
            bytes_accessed=n * t * itemsize + 2 * num_par * 4,
        ),
    )(xt)

    return jnp.sum(num_parts) / jnp.sum(den_parts)


def _reference(x):
    """Pure-JAX reference for correctness checking."""
    oc, ic, t = x.shape
    xf = x.reshape(oc * ic, t).astype(jnp.float32)
    xp = jnp.pad(xf, ((0, 0), (1, 1)))
    y = 4.0 * xf - xp[:, :-2] - xp[:, 2:]
    return jnp.sum(y * y) / jnp.sum(xf * xf)


if __name__ == "__main__":
    # Case 1: typical small conv-weight shape, float32 (single masked block).
    oc, ic, t = 4, 3, 16
    x = jax.random.normal(jax.random.PRNGKey(0), (oc, ic, t), dtype=jnp.float32)
    out = jax.block_until_ready(time_laplace_l2_3d(x, avg=False))
    ref = _reference(x)
    assert jnp.allclose(out, ref, rtol=1e-5, atol=1e-5), (out, ref)

    # Case 2: larger bfloat16 input exercising the native-dtype path and the
    # unmasked single-large-block path (n = 6400 is a multiple of 128).
    x2 = jax.random.normal(jax.random.PRNGKey(0), (64, 100, 16),
                           dtype=jnp.bfloat16)
    out2 = jax.block_until_ready(time_laplace_l2_3d(x2, avg=True))
    ref2 = _reference(x2)
    assert jnp.allclose(out2, ref2, rtol=1e-3, atol=1e-3), (out2, ref2)

    # Case 3: odd shapes (n not a multiple of 128, t not a multiple of 8)
    # exercising the ragged-lane mask and boundary handling.
    x3 = jax.random.normal(jax.random.PRNGKey(0), (5, 7, 11), dtype=jnp.float32)
    out3 = jax.block_until_ready(time_laplace_l2_3d(x3, avg=False))
    ref3 = _reference(x3)
    assert jnp.allclose(out3, ref3, rtol=1e-5, atol=1e-5), (out3, ref3)

    print("KERNEL_OK")
</pallas_src>

<mosaic_0001>
module attributes {stable_mosaic.version = 11 : i64} {
  func.func @_time_laplace_kernel(%arg0: i32, %arg1: i32, %arg2: memref<16x128xf32, #tpu.memory_space<vmem>>, %arg3: memref<1x1x1xf32, #tpu.memory_space<vmem>>, %arg4: memref<1x1x1xf32, #tpu.memory_space<vmem>>, %arg5: memref<1x128xf32, #tpu.memory_space<vmem>>, %arg6: memref<1x128xf32, #tpu.memory_space<vmem>>) attributes {dimension_semantics = [#tpu.dimension_semantics<parallel>, #tpu.dimension_semantics<arbitrary>], iteration_bounds = array<i64: 1, 1>, scalar_prefetch = 0 : i64, scratch_operands = 2 : i64, tpu.core_type = #tpu.core_type<tc>, window_params = [{transform_indices = @transform_0, window_bounds = array<i64: 16, 128>}, {transform_indices = @transform_1, window_bounds = array<i64: 1, 1, 1>}, {transform_indices = @transform_2, window_bounds = array<i64: 1, 1, 1>}]} {
    %c0_i32 = arith.constant 0 : i32
    %0 = arith.cmpi eq, %arg1, %c0_i32 : i32
    %1 = arith.extui %0 : i1 to i32
    %c0_i32_0 = arith.constant 0 : i32
    %2 = arith.cmpi ne, %1, %c0_i32_0 : i32
    scf.if %2 {
      %cst_17 = arith.constant 0.000000e+00 : f32
      %50 = vector.broadcast %cst_17 : f32 to vector<1x128xf32>
      %c0_18 = arith.constant 0 : index
      %c0_19 = arith.constant 0 : index
      %51 = vector.load %arg5[%c0_18, %c0_19] : memref<1x128xf32, #tpu.memory_space<vmem>>, vector<1x128xf32>
      tpu.vector_store %arg5[%c0_18, %c0_19], %50 {strides = array<i32>} : memref<1x128xf32, #tpu.memory_space<vmem>>, vector<1x128xf32>,
      %cst_20 = arith.constant 0.000000e+00 : f32
      %52 = vector.broadcast %cst_20 : f32 to vector<1x128xf32>
      %c0_21 = arith.constant 0 : index
      %c0_22 = arith.constant 0 : index
      %53 = vector.load %arg6[%c0_21, %c0_22] : memref<1x128xf32, #tpu.memory_space<vmem>>, vector<1x128xf32>
      tpu.vector_store %arg6[%c0_21, %c0_22], %52 {strides = array<i32>} : memref<1x128xf32, #tpu.memory_space<vmem>>, vector<1x128xf32>,
    } else {
    }
    %c0 = arith.constant 0 : index
    %c0_1 = arith.constant 0 : index
    %3 = vector.load %arg2[%c0, %c0_1] : memref<16x128xf32, #tpu.memory_space<vmem>>, vector<16x128xf32>
    %c1_i32 = arith.constant 1 : i32
    %4 = arith.muli %arg0, %c1_i32 : i32
    %5 = arith.addi %4, %arg1 : i32
    %c128_i32 = arith.constant 128 : i32
    %6 = arith.muli %5, %c128_i32 : i32
    %7 = tpu.iota {dimensions = array<i32: 1>} : vector<16x128xi32>
    %8 = vector.broadcast %6 : i32 to vector<16x128xi32>
    %9 = arith.addi %8, %7 : vector<16x128xi32>
    %c12_i32 = arith.constant 12 : i32
    %10 = vector.broadcast %c12_i32 : i32 to vector<16x128xi32>
    %11 = arith.cmpi slt, %9, %10 : vector<16x128xi32>
    %cst = arith.constant 0.000000e+00 : f32
    %12 = vector.broadcast %cst : f32 to vector<16x128xf32>
    %13 = arith.select %11, %3, %12 : vector<16x128xi1>, vector<16x128xf32>
    %14 = vector.extract_strided_slice %13 {offsets = [1, 0], sizes = [14, 128], strides = [1, 1]} : vector<16x128xf32> to vector<14x128xf32>
    %cst_2 = arith.constant 4.000000e+00 : f32
    %15 = vector.broadcast %cst_2 : f32 to vector<14x128xf32>
    %16 = arith.mulf %15, %14 : vector<14x128xf32>
    %17 = vector.extract_strided_slice %13 {offsets = [0, 0], sizes = [14, 128], strides = [1, 1]} : vector<16x128xf32> to vector<14x128xf32>
    %18 = arith.subf %16, %17 : vector<14x128xf32>
    %19 = vector.extract_strided_slice %13 {offsets = [2, 0], sizes = [14, 128], strides = [1, 1]} : vector<16x128xf32> to vector<14x128xf32>
    %20 = arith.subf %18, %19 : vector<14x128xf32>
    %21 = arith.mulf %20, %20 : vector<14x128xf32>
    %cst_3 = arith.constant dense<0.000000e+00> : vector<128xf32>
    %22 = vector.multi_reduction <add>, %21, %cst_3 [0] : vector<14x128xf32> to vector<128xf32>
    %23 = vector.shape_cast %22 : vector<128xf32> to vector<1x128xf32>
    %24 = vector.extract_strided_slice %13 {offsets = [0, 0], sizes = [1, 128], strides = [1, 1]} : vector<16x128xf32> to vector<1x128xf32>
    %cst_4 = arith.constant 4.000000e+00 : f32
    %25 = vector.broadcast %cst_4 : f32 to vector<1x128xf32>
    %26 = arith.mulf %25, %24 : vector<1x128xf32>
    %27 = vector.extract_strided_slice %13 {offsets = [1, 0], sizes = [1, 128], strides = [1, 1]} : vector<16x128xf32> to vector<1x128xf32>
    %28 = arith.subf %26, %27 : vector<1x128xf32>
    %29 = vector.extract_strided_slice %13 {offsets = [15, 0], sizes = [1, 128], strides = [1, 1]} : vector<16x128xf32> to vector<1x128xf32>
    %cst_5 = arith.constant 4.000000e+00 : f32
    %30 = vector.broadcast %cst_5 : f32 to vector<1x128xf32>
    %31 = arith.mulf %30, %29 : vector<1x128xf32>
    %32 = vector.extract_strided_slice %13 {offsets = [14, 0], sizes = [1, 128], strides = [1, 1]} : vector<16x128xf32> to vector<1x128xf32>
    %33 = arith.subf %31, %32 : vector<1x128xf32>
    %34 = arith.mulf %28, %28 : vector<1x128xf32>
    %35 = arith.mulf %33, %33 : vector<1x128xf32>
    %36 = arith.addf %34, %35 : vector<1x128xf32>
    %c0_6 = arith.constant 0 : index
    %c0_7 = arith.constant 0 : index
    %37 = vector.load %arg5[%c0_6, %c0_7] : memref<1x128xf32, #tpu.memory_space<vmem>>, vector<1x128xf32>
    %38 = arith.addf %23, %36 : vector<1x128xf32>
    %39 = arith.addf %37, %38 : vector<1x128xf32>
    %c0_8 = arith.constant 0 : index
    %c0_9 = arith.constant 0 : index
    %40 = vector.load %arg5[%c0_8, %c0_9] : memref<1x128xf32, #tpu.memory_space<vmem>>, vector<1x128xf32>
    tpu.vector_store %arg5[%c0_8, %c0_9], %39 {strides = array<i32>} : memref<1x128xf32, #tpu.memory_space<vmem>>, vector<1x128xf32>,
    %c0_10 = arith.constant 0 : index
    %c0_11 = arith.constant 0 : index
    %41 = vector.load %arg6[%c0_10, %c0_11] : memref<1x128xf32, #tpu.memory_space<vmem>>, vector<1x128xf32>
    %42 = arith.mulf %13, %13 : vector<16x128xf32>
    %cst_12 = arith.constant dense<0.000000e+00> : vector<128xf32>
    %43 = vector.multi_reduction <add>, %42, %cst_12 [0] : vector<16x128xf32> to vector<128xf32>
    %44 = vector.shape_cast %43 : vector<128xf32> to vector<1x128xf32>
    %45 = arith.addf %41, %44 : vector<1x128xf32>
    %c0_13 = arith.constant 0 : index
    %c0_14 = arith.constant 0 : index
    %46 = vector.load %arg6[%c0_13, %c0_14] : memref<1x128xf32, #tpu.memory_space<vmem>>, vector<1x128xf32>
    tpu.vector_store %arg6[%c0_13, %c0_14], %45 {strides = array<i32>} : memref<1x128xf32, #tpu.memory_space<vmem>>, vector<1x128xf32>,
    %c0_i32_15 = arith.constant 0 : i32
    %47 = arith.cmpi eq, %arg1, %c0_i32_15 : i32
    %48 = arith.extui %47 : i1 to i32
    %c0_i32_16 = arith.constant 0 : i32
    %49 = arith.cmpi ne, %48, %c0_i32_16 : i32
    scf.if %49 {
      %c0_17 = arith.constant 0 : index
      %c0_18 = arith.constant 0 : index
      %50 = vector.load %arg5[%c0_17, %c0_18] : memref<1x128xf32, #tpu.memory_space<vmem>>, vector<1x128xf32>
      %51 = vector.shape_cast %50 : vector<1x128xf32> to vector<1x1x128xf32>
      %cst_19 = arith.constant dense<0.000000e+00> : vector<1xf32>
      %52 = vector.multi_reduction <add>, %51, %cst_19 [1, 2] : vector<1x1x128xf32> to vector<1xf32>
      %53 = vector.shape_cast %52 : vector<1xf32> to vector<1x1x1xf32>
      %54 = vector.extract %53[0, 0, 0] : f32 from vector<1x1x1xf32>
      %55 = vector.broadcast %54 : f32 to vector<1x1x1xf32>
      %c0_20 = arith.constant 0 : index
      %c0_21 = arith.constant 0 : index
      %c0_22 = arith.constant 0 : index
      %56 = vector.load %arg3[%c0_20, %c0_21, %c0_22] : memref<1x1x1xf32, #tpu.memory_space<vmem>>, vector<1x1x1xf32>
      tpu.vector_store %arg3[%c0_20, %c0_21, %c0_22], %55 {strides = array<i32>} : memref<1x1x1xf32, #tpu.memory_space<vmem>>, vector<1x1x1xf32>,
      %c0_23 = arith.constant 0 : index
      %c0_24 = arith.constant 0 : index
      %57 = vector.load %arg6[%c0_23, %c0_24] : memref<1x128xf32, #tpu.memory_space<vmem>>, vector<1x128xf32>
      %58 = vector.shape_cast %57 : vector<1x128xf32> to vector<1x1x128xf32>
      %cst_25 = arith.constant dense<0.000000e+00> : vector<1xf32>
      %59 = vector.multi_reduction <add>, %58, %cst_25 [1, 2] : vector<1x1x128xf32> to vector<1xf32>
      %60 = vector.shape_cast %59 : vector<1xf32> to vector<1x1x1xf32>
      %61 = vector.extract %60[0, 0, 0] : f32 from vector<1x1x1xf32>
      %62 = vector.broadcast %61 : f32 to vector<1x1x1xf32>
      %c0_26 = arith.constant 0 : index
      %c0_27 = arith.constant 0 : index
      %c0_28 = arith.constant 0 : index
      %63 = vector.load %arg4[%c0_26, %c0_27, %c0_28] : memref<1x1x1xf32, #tpu.memory_space<vmem>>, vector<1x1x1xf32>
      tpu.vector_store %arg4[%c0_26, %c0_27, %c0_28], %62 {strides = array<i32>} : memref<1x1x1xf32, #tpu.memory_space<vmem>>, vector<1x1x1xf32>,
    } else {
    }
    return
  }
  func.func @transform_0(%arg0: i32, %arg1: i32) -> (i32, i32) {
    %c1_i32 = arith.constant 1 : i32
    %0 = arith.muli %arg0, %c1_i32 : i32
    %1 = arith.addi %0, %arg1 : i32
    %c0_i32 = arith.constant 0 : i32
    %2 = arith.minsi %1, %c0_i32 : i32
    %c0_i32_0 = arith.constant 0 : i32
    %c0_i32_1 = arith.constant 0 : i32
    return %c0_i32_0, %2 : i32, i32
  }
  func.func @transform_1(%arg0: i32, %arg1: i32) -> (i32, i32, i32) {
    %c0_i32 = arith.constant 0 : i32
    %c0_i32_0 = arith.constant 0 : i32
    %c0_i32_1 = arith.constant 0 : i32
    return %arg0, %c0_i32, %c0_i32_0 : i32, i32, i32
  }
  func.func @transform_2(%arg0: i32, %arg1: i32) -> (i32, i32, i32) {
    %c0_i32 = arith.constant 0 : i32
    %c0_i32_0 = arith.constant 0 : i32
    %c0_i32_1 = arith.constant 0 : i32
    return %arg0, %c0_i32, %c0_i32_0 : i32, i32, i32
  }
}

</mosaic_0001>

<llo_original>
// kernel: tpu_custom_call.1
$region0: #{tpu_custom_call.1}
  #allocation0 [shape = 'u32[]', space=smem, size = 0x4, offset = 0x4, fixed_abs, tag = 'smem constant byte address 0x4 - core index']
  #allocation1 [shape = 'u32[144,128]{1,0:T(1,128)}', space=vmem, size = 0x12000, scoped, tag = 'internal scratch']
  #allocation2 [shape = 'f32[1,128]{1,0:T(1,128)}', space=vmem, size = 0x200, scoped, tag = 'scratch operand']
  #allocation3 [shape = 'f32[1,128]{1,0:T(1,128)}', space=vmem, size = 0x200, scoped, tag = 'scratch operand']
  %s0 = inlined_call_operand.hbm [shape: f32[16,12], index: 0, kind: input, shape index: {}]
  %s1 = inlined_call_operand.hbm [shape: f32[1,1,1], index: 1, kind: output, shape index: {0}]
  %s2 = inlined_call_operand.hbm [shape: f32[1,1,1], index: 2, kind: output, shape index: {1}]
  %3 = xla_tuple %s1, %s2
  %s4 = sld [smem:[#allocation0]]
  $region34: #{tpu_custom_call.1} parent=0
    _
  %s6 = ssub.s32 1, %s4
  %s7 = scalar_select 0, %s6, %s4
  $region1: #{tpu_custom_call.1} parent=0
    #allocation4 [shape = 'u8[8192]{0}', space=vmem, size = 0x2000, scoped, tag = 'input window, operand 0, single buffered']
    #allocation5 [shape = 's32[1]{0}', space=sflag, size = 0x4, scoped, tag = 'scoped memory for tpu_custom_call.1']
    #allocation6 [shape = 's32[1]{0}', space=sflag, size = 0x4, scoped, tag = 'scoped memory for tpu_custom_call.1']
    #allocation7 [shape = 'u8[512]{0}', space=vmem, size = 0x400, scoped, tag = 'output window, operand 0, single buffered']
    #allocation8 [shape = 'u8[512]{0}', space=vmem, size = 0x400, scoped, tag = 'output window, operand 1, single buffered']
    #allocation9 [shape = 's32[1]{0}', space=sflag, size = 0x4, scoped, tag = 'scoped memory for tpu_custom_call.1']
    %8 = vsyncpa [#allocation5], 0
    %9 = vsyncpa [#allocation6], 0
    %10 = vsyncpa [#allocation9], 0
    // Predicated region
    $region2: #{tpu_custom_call.1} parent=1 // pred_check
      _
    $region3: #{tpu_custom_call.1} parent=1 // pred_check_branch
      %12 = sbr.rel (0) target = $region5
    $region4: #{tpu_custom_call.1} parent=1 // pred_region
      %s13 = sadd.s32 0, 0
      %p14 = scmp.lt.s32.totalorder %s13, 0
      %s15 = scalar_select %p14, %s13, 0
      %s17 = ssub.s32 256, 256
      %18 = vsyncadd [#allocation5], %s17
      %s19 = smul.addr %s15, 128
      %s20 = scalar_lea.hbm %s0, %s19
      %s21 = sshll.u32 [#allocation4], 4
      %s22 = int_to_ptr.vmem [resolvable:$true] %s21
      %27 = dma.hbm_to_vmem [thread:$0]  %s20, 256, %s22, [#allocation5], 128, 128, 8
    $region5: #{tpu_custom_call.1} parent=1 // pred_fallthru
      _
    // Predicated region
    $region6: #{tpu_custom_call.1} parent=1 // pred_check
      _
    $region7: #{tpu_custom_call.1} parent=1 // pred_check_branch
      %29 = sbr.rel (0) target = $region9
    $region8: #{tpu_custom_call.1} parent=1 // pred_region
      %30 = dma.done [#allocation5], 256
    $region9: #{tpu_custom_call.1} parent=1 // pred_fallthru
      _
    %s31 = sadd.s32 0, 0
    %p32 = scmp.lt.s32.totalorder %s31, 0
    %s33 = scalar_select %p32, %s31, 0
    %p34 = scmp.eq.s32.totalorder 0, 0
    // Predicated region
    $region10: #{tpu_custom_call.1} parent=1 // pred_check
      %p35 = pneg %p34
    $region11: #{tpu_custom_call.1} parent=1 // pred_check_branch
      %37 = sbr.rel (%p35) target = $region13
    $region12: #{tpu_custom_call.1} parent=1 // pred_region
      %38 = vst [vmem:[#allocation2] sm:$0x1] 0.0
      %39 = vst [vmem:[#allocation3] sm:$0x1] 0.0
    $region13: #{tpu_custom_call.1} parent=1 // pred_fallthru
      _
    %v40 = vld [vmem:[#allocation4] sm:$0xff]
    %v41 = vld [vmem:[#allocation4 + $0x8] sm:$0xff]
    %s42 = sadd.s32 0, 0
    %s43 = smul.u32 %s42, 128
    %v44 = vlaneseq
    %v45 = vand.u32 %v44, 127
    %v46 = vstv %s43
    %v47 = vadd.s32 %v46, %v45
    %vm48 = vcmp.lt.s32.totalorder %v47, 12
    %v49 = vsel %vm48, %v40, 0.0
    %v50 = vsel %vm48, %v41, 0.0
    %v51 = vmul.f32 %v49, 4.0
    %v52 = vmul.f32 %v50, 4.0
    %vm55 = vcmask 1040384
    %v56 = vrot.slane %v49, 7
    %v57 = vrot.slane %v50, 7
    %v58 = vsel %vm55, %v56, %v57
    %v61 = vsub.f32 %v51, %v56
    %v62 = vsub.f32 %v52, %v58
    %vm63 = vcmask 1046528
    %v64 = vrot.slane %v49, 1
    %v65 = vrot.slane %v50, 1
    %v66 = vsel %vm63, %v64, %v65
    %v69 = vsub.f32 %v61, %v66
    %v70 = vsub.f32 %v62, %v65
    %v71 = vmul.f32 %v69, %v69
    %v72 = vmul.f32 %v70, %v70
    %v75 = vrot.slane %v71, 1
    %v76 = vrot.slane %v72, 1
    %v77 = vsel %vm63, %v75, %v76
    %vm80 = vcmask 1045504
    %v81 = vsel %vm80, %v76, 0.0
    %v82 = vadd.f32 %v77, %v81
    %v83 = vrot.slane %v82, 4
    %v84 = vadd.f32 %v82, %v83
    %v85 = vrot.slane %v84, 2
    %v86 = vadd.f32 %v84, %v85
    %v87 = vrot.slane %v86, 1
    %v88 = vadd.f32 %v86, %v87
    %v90 = vsub.f32 %v51, %v64
    %v92 = vsub.f32 %v52, %v57
    %v93 = vmul.f32 %v90, %v90
    %v94 = vmul.f32 %v92, %v92
    %v96 = vrot.slane %v94, 7
    %v98 = vadd.f32 %v93, %v96
    %v99 = vld [vmem:[#allocation2] sm:$0x1]
    %v100 = vadd.f32 %v88, %v98
    %v101 = vadd.f32 %v99, %v100
    %102 = vst [vmem:[#allocation2] sm:$0x1] %v101
    %v103 = vld [vmem:[#allocation3] sm:$0x1]
    %v104 = vmul.f32 %v49, %v49
    %v105 = vmul.f32 %v50, %v50
    %v106 = vadd.f32 %v104, %v105
    %v107 = vrot.slane %v106, 4
    %v108 = vadd.f32 %v106, %v107
    %v109 = vrot.slane %v108, 2
    %v110 = vadd.f32 %v108, %v109
    %v111 = vrot.slane %v110, 1
    %v112 = vadd.f32 %v110, %v111
    %v113 = vadd.f32 %v103, %v112
    %114 = vst [vmem:[#allocation3] sm:$0x1] %v113
    // Predicated region
    $region14: #{tpu_custom_call.1} parent=1 // pred_check
      %p115 = pneg %p34
    $region15: #{tpu_custom_call.1} parent=1 // pred_check_branch
      %117 = sbr.rel (%p115) target = $region17
    $region16: #{tpu_custom_call.1} parent=1 // pred_region
      %v118 = vld [vmem:[#allocation2] sm:$0x1]
      %v119 = vsel %vm55, %v118, 0.0
      %120 = vadd.xlane.f32.xlu0 %v119
      %v121 = vpop.xlane.xlu0 %120
      %v122 = vrot.slane %v121, 4
      %v123 = vadd.f32 %v121, %v122
      %v124 = vrot.slane %v123, 2
      %v125 = vadd.f32 %v123, %v124
      %v126 = vrot.slane %v125, 1
      %v127 = vadd.f32 %v125, %v126
      %s128 = vtos %v127
      %v129 = vstv %s128
      %vm130 = vcmask 0
      %131 = vst.msk [vmem:[#allocation7] sm:$0x1] %vm130, %v129
      %v132 = vld [vmem:[#allocation3] sm:$0x1]
      %v133 = vsel %vm55, %v132, 0.0
      %134 = vadd.xlane.f32.xlu0 %v133
      %v135 = vpop.xlane.xlu0 %134
      %v136 = vrot.slane %v135, 4
      %v137 = vadd.f32 %v135, %v136
      %v138 = vrot.slane %v137, 2
      %v139 = vadd.f32 %v137, %v138
      %v140 = vrot.slane %v139, 1
      %v141 = vadd.f32 %v139, %v140
      %s142 = vtos %v141
      %v143 = vstv %s142
      %144 = vst.msk [vmem:[#allocation8] sm:$0x1] %vm130, %v143
    $region17: #{tpu_custom_call.1} parent=1 // pred_fallthru
      _
    // Predicated region
    $region18: #{tpu_custom_call.1} parent=1 // pred_check
      _
    $region19: #{tpu_custom_call.1} parent=1 // pred_check_branch
      %146 = sbr.rel (0) target = $region21
    $region20: #{tpu_custom_call.1} parent=1 // pred_region
      %s148 = ssub.s32 16, 16
      %149 = vsyncadd [#allocation6], %s148
      %s151 = sshll.u32 [#allocation7], 4
      %s152 = int_to_ptr.vmem [resolvable:$true] %s151
      %154 = dma.vmem_to_hbm [thread:$0]  %s152, 16, %s1, [#allocation6]
    $region21: #{tpu_custom_call.1} parent=1 // pred_fallthru
      _
    // Predicated region
    $region22: #{tpu_custom_call.1} parent=1 // pred_check
      _
    $region23: #{tpu_custom_call.1} parent=1 // pred_check_branch
      %156 = sbr.rel (0) target = $region25
    $region24: #{tpu_custom_call.1} parent=1 // pred_region
      %s158 = ssub.s32 16, 16
      %159 = vsyncadd [#allocation9], %s158
      %s161 = sshll.u32 [#allocation8], 4
      %s162 = int_to_ptr.vmem [resolvable:$true] %s161
      %164 = dma.vmem_to_hbm [thread:$0]  %s162, 16, %s2, [#allocation9]
    $region25: #{tpu_custom_call.1} parent=1 // pred_fallthru
      _
    // Predicated region
    $region26: #{tpu_custom_call.1} parent=1 // pred_check
      _
    $region27: #{tpu_custom_call.1} parent=1 // pred_check_branch
      %166 = sbr.rel (0) target = $region29
    $region28: #{tpu_custom_call.1} parent=1 // pred_region
      %167 = dma.done [#allocation6], 16
    $region29: #{tpu_custom_call.1} parent=1 // pred_fallthru
      _
    // Predicated region
    $region30: #{tpu_custom_call.1} parent=1 // pred_check
      _
    $region31: #{tpu_custom_call.1} parent=1 // pred_check_branch
      %169 = sbr.rel (0) target = $region33
    $region32: #{tpu_custom_call.1} parent=1 // pred_region
      %170 = dma.done [#allocation9], 16
    $region33: #{tpu_custom_call.1} parent=1 // pred_fallthru
      _
    %171 = vsyncpa [#allocation5], 1
    %172 = vsyncpa [#allocation6], 1
    %173 = vsyncpa [#allocation9], 1

</llo_original>
